<compile_context>
chip_gen: v6e
topology: v6e:2x2x1
jax: 0.10.0
libtpu: 0.0.40
codegen_flags: <defaults>
</compile_context>

<pallas_src>
import functools

import jax
import jax.numpy as jnp
from jax.experimental import pallas as pl
from jax.experimental.pallas import tpu as pltpu

_LANES = 128
_SUBLANES = 8
_PARTIAL_ROWS = 64            # 8 independent (8,128) accumulator vregs / block
_SINGLE_BLOCK_ROWS = 1024     # <= this many rows -> one block
_MAX_BLOCK_ROWS = 8192        # 8192*128*4B = 4 MiB per f32 input tile
_VMEM_CAP_BYTES = 48 << 20    # headroom under v7x's 64 MiB physical VMEM
_EPS = 1e-12
_LOG2 = 0.6931471805599453


def _round_up(x, m):
    return (x + m - 1) // m * m


def _logcosh_f32(x, t):
    """Elementwise log(cosh(x - t + eps)) in f32, overflow-safe."""
    d = x.astype(jnp.float32) - t.astype(jnp.float32) + jnp.float32(_EPS)
    a = jnp.abs(d)
    # TODO(synk): on v7x (HBM ~3.2 TB/s) the 2 EUP transcendentals/elem can
    # become the bottleneck; a bf16 exp or a VPU-only rational approximation
    # of log1p(exp(-y)) would halve EUP load there.
    return a + jnp.log(1.0 + jnp.exp(-2.0 * a)) - jnp.float32(_LOG2)


def _reduce_kernel(x_ref, t_ref, o_ref, *, block_rows, partial_rows,
                   rows_total, needs_mask):
    loss = _logcosh_f32(x_ref[...], t_ref[...])

    def _partial(v):
        # (block_rows,128) -> (block_rows//p, p, 128), sum over the leading
        # axis: p//8 independent vreg accumulation chains, pure VPU adds.
        return jnp.sum(
            v.reshape(block_rows // partial_rows, partial_rows, _LANES), axis=0)

    if not needs_mask:
        o_ref[...] = _partial(loss)
    else:
        i = pl.program_id(0)
        is_last = i == pl.num_programs(0) - 1

        @pl.when(jnp.logical_not(is_last))
        def _():
            o_ref[...] = _partial(loss)

        @pl.when(is_last)
        def _():
            # Only the ragged final block pays for the mask; in-block row
            # indices vs a per-block valid count (no global-index overflow).
            valid_rows = rows_total - i * block_rows
            row = jax.lax.broadcasted_iota(jnp.int32, loss.shape, 0)
            o_ref[...] = _partial(jnp.where(row < valid_rows, loss, 0.0))


def _elementwise_kernel(x_ref, t_ref, o_ref):
    o_ref[...] = _logcosh_f32(x_ref[...], t_ref[...]).astype(o_ref.dtype)


def _pick_blocking(rows):
    """Returns (block_rows, partial_rows)."""
    rows_padded = _round_up(rows, _PARTIAL_ROWS)
    if rows_padded <= _SINGLE_BLOCK_ROWS:
        block_rows = rows_padded
    else:
        # Even, roughly balanced number of blocks (keeps both v7x TCs fed via
        # the "parallel" grid axis), capped at _MAX_BLOCK_ROWS per block.
        n_pairs = pl.cdiv(rows_padded, 2 * _MAX_BLOCK_ROWS)
        block_rows = _round_up(pl.cdiv(rows_padded, 2 * n_pairs), _PARTIAL_ROWS)
    block_rows = min(block_rows, _round_up(rows, _SUBLANES))
    partial_rows = (_PARTIAL_ROWS if block_rows % _PARTIAL_ROWS == 0
                    else _SUBLANES)
    return block_rows, partial_rows


def _vmem_limit_bytes(block_rows, in_itemsize, out_tile_bytes):
    # 2 inputs x 2 double-buffers + 2 output buffers, plus headroom.
    need = 2 * 2 * block_rows * _LANES * in_itemsize + 2 * out_tile_bytes
    need += 4 << 20
    return int(min(max(need, 16 << 20), _VMEM_CAP_BYTES))


def log_cosh_loss(inputs, targets, reduction="mean"):
    """Pallas implementation of LogCoshLoss.forward."""
    assert inputs.shape == targets.shape
    orig_shape = inputs.shape
    orig_dtype = inputs.dtype

    x = inputs.reshape(-1)
    t = targets.reshape(-1)
    n = x.shape[0]
    rows = n // _LANES
    n_main = rows * _LANES
    n_tail = n - n_main
    itemsize = jnp.dtype(orig_dtype).itemsize

    main_out = None
    if rows > 0:
        # 128-aligned prefix (free reshape; no jnp.pad full copy of inputs).
        x2 = x[:n_main].reshape(rows, _LANES)
        t2 = t[:n_main].reshape(rows, _LANES)
        block_rows, partial_rows = _pick_blocking(rows)
        n_blocks = pl.cdiv(rows, block_rows)
        needs_mask = (rows % block_rows) != 0

        in_specs = [
            pl.BlockSpec((block_rows, _LANES), lambda i: (i, 0)),
            pl.BlockSpec((block_rows, _LANES), lambda i: (i, 0)),
        ]

        if reduction in ("mean", "sum"):
            out_tile_bytes = partial_rows * _LANES * 4
            kernel = functools.partial(
                _reduce_kernel,
                block_rows=block_rows,
                partial_rows=partial_rows,
                rows_total=rows,
                needs_mask=needs_mask,
            )
            partials = pl.pallas_call(
                kernel,
                out_shape=jax.ShapeDtypeStruct(
                    (n_blocks * partial_rows, _LANES), jnp.float32),
                grid_spec=pltpu.PrefetchScalarGridSpec(
                    num_scalar_prefetch=0,
                    grid=(n_blocks,),
                    in_specs=in_specs,
                    out_specs=pl.BlockSpec(
                        (partial_rows, _LANES), lambda i: (i, 0)),
                ),
                compiler_params=pltpu.CompilerParams(
                    dimension_semantics=("parallel",),
                    vmem_limit_bytes=_vmem_limit_bytes(
                        block_rows, itemsize, out_tile_bytes)),
                cost_estimate=pl.CostEstimate(
                    flops=10 * n_main,
                    transcendentals=2 * n_main,
                    bytes_accessed=2 * n_main * itemsize
                    + n_blocks * partial_rows * _LANES * 4),
            )(x2, t2)
            main_out = jnp.sum(partials)
        else:
            out_tile_bytes = block_rows * _LANES * itemsize
            main_out = pl.pallas_call(
                _elementwise_kernel,
                out_shape=jax.ShapeDtypeStruct((rows, _LANES), orig_dtype),
                grid_spec=pltpu.PrefetchScalarGridSpec(
                    num_scalar_prefetch=0,
                    grid=(n_blocks,),
                    in_specs=in_specs,
                    out_specs=pl.BlockSpec(
                        (block_rows, _LANES), lambda i: (i, 0)),
                ),
                compiler_params=pltpu.CompilerParams(
                    dimension_semantics=("parallel",),
                    vmem_limit_bytes=_vmem_limit_bytes(
                        block_rows, itemsize, out_tile_bytes)),
                cost_estimate=pl.CostEstimate(
                    flops=10 * n_main,
                    transcendentals=2 * n_main,
                    bytes_accessed=3 * n_main * itemsize),
            )(x2, t2)

    # <128-element ragged tail (and tiny inputs) handled in plain JAX.
    # TODO(synk): fold the tail into the kernel's last block to stay fully on
    # the Pallas path for ragged shapes.
    tail_loss = None
    if n_tail > 0:
        tail_loss = _logcosh_f32(x[n_main:], t[n_main:])

    if reduction in ("mean", "sum"):
        total = jnp.zeros((), jnp.float32)
        if main_out is not None:
            total = total + main_out
        if tail_loss is not None:
            total = total + jnp.sum(tail_loss)
        if reduction == "mean":
            total = total / jnp.float32(n)
        return total.astype(orig_dtype)

    # reduction == 'none': elementwise output, input's shape & dtype.
    parts = []
    if main_out is not None:
        parts.append(main_out.reshape(-1))
    if tail_loss is not None:
        parts.append(tail_loss.astype(orig_dtype))
    out = parts[0] if len(parts) == 1 else jnp.concatenate(parts)
    return out.reshape(orig_shape)


if __name__ == "__main__":
    key = jax.random.PRNGKey(0)
    k1, k2, k3, k4, k5, k6 = jax.random.split(key, 6)

    def ref_loss(a, b, reduction):
        l = jnp.log(jnp.cosh((a - b) + 1e-12))
        if reduction == "mean":
            return l.mean()
        if reduction == "sum":
            return l.sum()
        return l

    # NCHW-style input as the PyTorch module would typically receive.
    inputs = jax.random.normal(k1, (2, 4, 16, 16), dtype=jnp.float32)
    targets = jax.random.normal(k2, (2, 4, 16, 16), dtype=jnp.float32)

    loss_mean = jax.block_until_ready(log_cosh_loss(inputs, targets, "mean"))
    loss_sum = jax.block_until_ready(log_cosh_loss(inputs, targets, "sum"))
    loss_none = jax.block_until_ready(log_cosh_loss(inputs, targets, "none"))

    assert jnp.allclose(loss_mean, ref_loss(inputs, targets, "mean"),
                        rtol=1e-5, atol=1e-5)
    assert jnp.allclose(loss_sum, ref_loss(inputs, targets, "sum"),
                        rtol=1e-5, atol=1e-3)
    assert jnp.allclose(loss_none, ref_loss(inputs, targets, "none"),
                        rtol=1e-5, atol=1e-5)
    assert loss_none.shape == inputs.shape
    assert loss_none.dtype == inputs.dtype

    # Ragged numel (not a multiple of 128): kernel prefix + plain-JAX tail.
    xr = jax.random.normal(k3, (3, 525), dtype=jnp.float32)   # 1575 elements
    tr = jax.random.normal(k4, (3, 525), dtype=jnp.float32)
    rm = jax.block_until_ready(log_cosh_loss(xr, tr, "mean"))
    rn = jax.block_until_ready(log_cosh_loss(xr, tr, "none"))
    assert jnp.allclose(rm, ref_loss(xr, tr, "mean"), rtol=1e-5, atol=1e-5)
    assert jnp.allclose(rn, ref_loss(xr, tr, "none"), rtol=1e-5, atol=1e-5)
    assert rn.shape == xr.shape

    # Multi-block grid with a ragged (pl.when-masked) final block.
    xm = jax.random.normal(k5, (1100, 128), dtype=jnp.float32)
    tm = jax.random.normal(k6, (1100, 128), dtype=jnp.float32)
    mm = jax.block_until_ready(log_cosh_loss(xm, tm, "mean"))
    assert jnp.allclose(mm, ref_loss(xm, tm, "mean"), rtol=1e-5, atol=1e-5)

    print("KERNEL_OK")
</pallas_src>

<mosaic_0001>
module attributes {stable_mosaic.version = 11 : i64} {
  func.func @_reduce_kernel(%arg0: i32, %arg1: memref<16x128xf32, #tpu.memory_space<vmem>>, %arg2: memref<16x128xf32, #tpu.memory_space<vmem>>, %arg3: memref<8x128xf32, #tpu.memory_space<vmem>>) attributes {dimension_semantics = [#tpu.dimension_semantics<parallel>], iteration_bounds = array<i64: 1>, scalar_prefetch = 0 : i64, scratch_operands = 0 : i64, tpu.core_type = #tpu.core_type<tc>, window_params = [{transform_indices = @transform_0, window_bounds = array<i64: 16, 128>}, {transform_indices = @transform_1, window_bounds = array<i64: 16, 128>}, {transform_indices = @transform_2, window_bounds = array<i64: 8, 128>}]} {
    %c0 = arith.constant 0 : index
    %c0_0 = arith.constant 0 : index
    %0 = vector.load %arg1[%c0, %c0_0] : memref<16x128xf32, #tpu.memory_space<vmem>>, vector<16x128xf32>
    %c0_1 = arith.constant 0 : index
    %c0_2 = arith.constant 0 : index
    %1 = vector.load %arg2[%c0_1, %c0_2] : memref<16x128xf32, #tpu.memory_space<vmem>>, vector<16x128xf32>
    %2 = arith.subf %0, %1 : vector<16x128xf32>
    %cst = arith.constant 9.99999996E-13 : f32
    %3 = vector.broadcast %cst : f32 to vector<16x128xf32>
    %4 = arith.addf %2, %3 : vector<16x128xf32>
    %5 = math.absf %4 : vector<16x128xf32>
    %cst_3 = arith.constant -2.000000e+00 : f32
    %6 = vector.broadcast %cst_3 : f32 to vector<16x128xf32>
    %7 = arith.mulf %6, %5 : vector<16x128xf32>
    %8 = math.exp %7 : vector<16x128xf32>
    %cst_4 = arith.constant 1.000000e+00 : f32
    %9 = vector.broadcast %cst_4 : f32 to vector<16x128xf32>
    %10 = arith.addf %9, %8 : vector<16x128xf32>
    %11 = math.log %10 : vector<16x128xf32>
    %12 = arith.addf %5, %11 : vector<16x128xf32>
    %cst_5 = arith.constant 0.693147182 : f32
    %13 = vector.broadcast %cst_5 : f32 to vector<16x128xf32>
    %14 = arith.subf %12, %13 : vector<16x128xf32>
    %15 = vector.shape_cast %14 : vector<16x128xf32> to vector<2x8x128xf32>
    %cst_6 = arith.constant dense<0.000000e+00> : vector<8x128xf32>
    %16 = vector.multi_reduction <add>, %15, %cst_6 [0] : vector<2x8x128xf32> to vector<8x128xf32>
    %c0_7 = arith.constant 0 : index
    %c0_8 = arith.constant 0 : index
    %17 = vector.load %arg3[%c0_7, %c0_8] : memref<8x128xf32, #tpu.memory_space<vmem>>, vector<8x128xf32>
    tpu.vector_store %arg3[%c0_7, %c0_8], %16 {strides = array<i32>} : memref<8x128xf32, #tpu.memory_space<vmem>>, vector<8x128xf32>,
    return
  }
  func.func @transform_0(%arg0: i32) -> (i32, i32) {
    %c0_i32 = arith.constant 0 : i32
    %c0_i32_0 = arith.constant 0 : i32
    return %arg0, %c0_i32 : i32, i32
  }
  func.func @transform_1(%arg0: i32) -> (i32, i32) {
    %c0_i32 = arith.constant 0 : i32
    %c0_i32_0 = arith.constant 0 : i32
    return %arg0, %c0_i32 : i32, i32
  }
  func.func @transform_2(%arg0: i32) -> (i32, i32) {
    %c0_i32 = arith.constant 0 : i32
    %c0_i32_0 = arith.constant 0 : i32
    return %arg0, %c0_i32 : i32, i32
  }
}

</mosaic_0001>

<llo_original>
// kernel: tpu_custom_call.1
$region0: #{tpu_custom_call.1}
  #allocation0 [shape = 'u32[]', space=smem, size = 0x4, offset = 0x4, fixed_abs, tag = 'smem constant byte address 0x4 - core index']
  #allocation1 [shape = 'u32[144,128]{1,0:T(1,128)}', space=vmem, size = 0x12000, scoped, tag = 'internal scratch']
  %s0 = inlined_call_operand.hbm [shape: f32[16,128], index: 0, kind: input, shape index: {}]
  %s1 = inlined_call_operand.hbm [shape: f32[16,128], index: 1, kind: input, shape index: {}]
  %s2 = inlined_call_operand.hbm [shape: f32[8,128], index: 2, kind: output, shape index: {}]
  %s3 = sld [smem:[#allocation0]]
  $region26: #{tpu_custom_call.1} parent=0
    _
  %s5 = ssub.s32 1, %s3
  %s6 = scalar_select 0, %s5, %s3
  $region1: #{tpu_custom_call.1} parent=0
    #allocation2 [shape = 'u8[8192]{0}', space=vmem, size = 0x2000, scoped, tag = 'input window, operand 0, single buffered']
    #allocation3 [shape = 's32[1]{0}', space=sflag, size = 0x4, scoped, tag = 'scoped memory for tpu_custom_call.1']
    #allocation4 [shape = 's32[1]{0}', space=sflag, size = 0x4, scoped, tag = 'scoped memory for tpu_custom_call.1']
    #allocation5 [shape = 'u8[8192]{0}', space=vmem, size = 0x2000, scoped, tag = 'input window, operand 1, single buffered']
    #allocation6 [shape = 's32[1]{0}', space=sflag, size = 0x4, scoped, tag = 'scoped memory for tpu_custom_call.1']
    #allocation7 [shape = 'u8[4096]{0}', space=vmem, size = 0x1000, scoped, tag = 'output window, operand 0, single buffered']
    %7 = vsyncpa [#allocation3], 0
    %8 = vsyncpa [#allocation6], 0
    %9 = vsyncpa [#allocation4], 0
    // Predicated region
    $region2: #{tpu_custom_call.1} parent=1 // pred_check
      _
    $region3: #{tpu_custom_call.1} parent=1 // pred_check_branch
      %11 = sbr.rel (0) target = $region5
    $region4: #{tpu_custom_call.1} parent=1 // pred_region
      %s13 = ssub.s32 256, 256
      %14 = vsyncadd [#allocation3], %s13
      %s15 = sshll.u32 [#allocation2], 4
      %s16 = int_to_ptr.vmem [resolvable:$true] %s15
      %21 = dma.hbm_to_vmem [thread:$0]  %s0, 256, %s16, [#allocation3], 128, 128, 8
    $region5: #{tpu_custom_call.1} parent=1 // pred_fallthru
      _
    // Predicated region
    $region6: #{tpu_custom_call.1} parent=1 // pred_check
      _
    $region7: #{tpu_custom_call.1} parent=1 // pred_check_branch
      %23 = sbr.rel (0) target = $region9
    $region8: #{tpu_custom_call.1} parent=1 // pred_region
      %s25 = ssub.s32 256, 256
      %26 = vsyncadd [#allocation6], %s25
      %s27 = sshll.u32 [#allocation5], 4
      %s28 = int_to_ptr.vmem [resolvable:$true] %s27
      %33 = dma.hbm_to_vmem [thread:$0]  %s1, 256, %s28, [#allocation6], 128, 128, 8
    $region9: #{tpu_custom_call.1} parent=1 // pred_fallthru
      _
    // Predicated region
    $region10: #{tpu_custom_call.1} parent=1 // pred_check
      _
    $region11: #{tpu_custom_call.1} parent=1 // pred_check_branch
      %35 = sbr.rel (0) target = $region13
    $region12: #{tpu_custom_call.1} parent=1 // pred_region
      %36 = dma.done [#allocation3], 256
    $region13: #{tpu_custom_call.1} parent=1 // pred_fallthru
      _
    // Predicated region
    $region14: #{tpu_custom_call.1} parent=1 // pred_check
      _
    $region15: #{tpu_custom_call.1} parent=1 // pred_check_branch
      %38 = sbr.rel (0) target = $region17
    $region16: #{tpu_custom_call.1} parent=1 // pred_region
      %39 = dma.done [#allocation6], 256
    $region17: #{tpu_custom_call.1} parent=1 // pred_fallthru
      _
    %v40 = vld [vmem:[#allocation2] sm:$0xff]
    %v41 = vld [vmem:[#allocation2 + $0x8] sm:$0xff]
    %v42 = vld [vmem:[#allocation5] sm:$0xff]
    %v43 = vld [vmem:[#allocation5 + $0x8] sm:$0xff]
    %v44 = vsub.f32 %v40, %v42
    %v45 = vsub.f32 %v41, %v43
    %v46 = vadd.f32 %v44, 1e-12
    %v47 = vadd.f32 %v45, 1e-12
    %v48 = vand.u32 2147483647, %v46
    %v49 = vand.u32 2147483647, %v47
    %v50 = vmul.f32 %v48, -2.0
    %v51 = vmul.f32 %v49, -2.0
    %v52 = vmul.f32 %v50, 1.442695
    %v53 = vpow.pop %v52
    %v54 = vmul.f32 %v51, 1.442695
    %v55 = vpow.pop %v54
    %v56 = vadd.f32 %v53, 1.0
    %v57 = vadd.f32 %v55, 1.0
    %v58 = vlog2.pop %v56
    %v59 = vmul.f32 %v58, 0.6931472
    %v60 = vlog2.pop %v57
    %v61 = vmul.f32 %v60, 0.6931472
    %v62 = vadd.f32 %v48, %v59
    %v63 = vadd.f32 %v49, %v61
    %v64 = vsub.f32 %v62, 0.6931472
    %v65 = vsub.f32 %v63, 0.6931472
    %v66 = vadd.f32 %v64, %v65
    %67 = vst [vmem:[#allocation7] sm:$0xff] %v66
    // Predicated region
    $region18: #{tpu_custom_call.1} parent=1 // pred_check
      _
    $region19: #{tpu_custom_call.1} parent=1 // pred_check_branch
      %69 = sbr.rel (0) target = $region21
    $region20: #{tpu_custom_call.1} parent=1 // pred_region
      %s71 = ssub.s32 128, 128
      %72 = vsyncadd [#allocation4], %s71
      %s74 = sshll.u32 [#allocation7], 4
      %s75 = int_to_ptr.vmem [resolvable:$true] %s74
      %77 = dma.vmem_to_hbm [thread:$0]  %s75, 128, %s2, [#allocation4]
    $region21: #{tpu_custom_call.1} parent=1 // pred_fallthru
      _
    // Predicated region
    $region22: #{tpu_custom_call.1} parent=1 // pred_check
      _
    $region23: #{tpu_custom_call.1} parent=1 // pred_check_branch
      %79 = sbr.rel (0) target = $region25
    $region24: #{tpu_custom_call.1} parent=1 // pred_region
      %80 = dma.done [#allocation4], 128
    $region25: #{tpu_custom_call.1} parent=1 // pred_fallthru
      _
    %81 = vsyncpa [#allocation3], 1
    %82 = vsyncpa [#allocation6], 1
    %83 = vsyncpa [#allocation4], 1

</llo_original>
